<compile_context>
chip_gen: v7x
topology: tpu7x:2x2x1
jax: 0.10.0
libtpu: 0.0.40
codegen_flags: <defaults>
</compile_context>

<pallas_src>
import functools

import jax
import jax.numpy as jnp
from jax.experimental import pallas as pl
from jax.experimental.pallas import tpu as pltpu


def _make_kernel(nb: int, inv_hw: float):
    """Kernel processing `nb` images per grid step; gate uses true-HW mean."""

    def kernel(x_ref, w1_ref, b1_ref, w3_ref, b3_ref, o_ref):
        w1 = w1_ref[...]            # (C_out, C_in), input dtype (bf16-native path)
        b1 = b1_ref[...]            # (C_out, 1)  f32 (conv bias + BN folded)
        w3 = w3_ref[...]            # (C_out, C_in) f32
        b3 = b3_ref[...]            # (C_out, 1)  f32

        for b in range(nb):         # nb is small & static; each iter independent
            x = x_ref[b]                                        # (C_in, HWp)

            # branch_1: grouped 1x1 conv + BN -> one lane-dense MXU matmul.
            y1 = jnp.dot(w1, x, preferred_element_type=jnp.float32) + b1

            # branch_3: AdaptiveAvgPool2d(1) -> 1x1 conv -> Sigmoid.
            # Pool first (zero-padded lanes contribute 0; divide by true HW),
            # then a negligible matvec instead of a full-width matmul.
            x_mean = jnp.sum(x.astype(jnp.float32), axis=-1,
                             keepdims=True) * inv_hw            # (C_in, 1)
            gate = jax.nn.sigmoid(jnp.dot(w3, x_mean) + b3)     # (C_out, 1)

            z = y1 * gate                                       # broadcast over lanes
            o_ref[b] = (z * jax.nn.sigmoid(z)).astype(o_ref.dtype)   # SiLU

    return kernel


def _grouped_to_blockdiag(w, c_in, groups):
    """Grouped 1x1 conv weight (C_out, C_in/groups, 1, 1) -> dense block-diag (C_out, C_in)."""
    c_out, cin_g = w.shape[0], w.shape[1]
    out_g = c_out // groups
    full = jnp.zeros((c_out, c_in), w.dtype)
    for g in range(groups):
        full = full.at[g * out_g:(g + 1) * out_g,
                       g * cin_g:(g + 1) * cin_g].set(w[g * out_g:(g + 1) * out_g, :, 0, 0])
    return full


def fuse_no_3x3(xs, params, *, dim=1, groups=2, eps=1e-5):
    """JAX/Pallas equivalent of Fuse_no_3x3.forward (inputs are NCHW tensors)."""
    x = jnp.concatenate(xs, axis=dim)        # torch.cat(x, self.dim)
    # nn.ChannelShuffle(1) is the identity -> nothing to emit.
    n, c_in, h, w = x.shape
    c_out = params["w1"].shape[0]
    hw = h * w
    hwp = ((hw + 127) // 128) * 128          # lane-dense padding (multiple of 128)

    # Fold eval-mode BatchNorm (running stats) into the branch_1 conv.
    scale = params["bn_w"] / jnp.sqrt(params["bn_var"] + eps)
    w1_full = _grouped_to_blockdiag(params["w1"], c_in, groups)
    w1_eff = (scale[:, None] * w1_full).astype(x.dtype)         # MXU in input dtype
    b1_eff = (scale * (params["b1"] - params["bn_mean"]) + params["bn_b"]).astype(jnp.float32)
    w3_full = _grouped_to_blockdiag(params["w3"], c_in, groups).astype(jnp.float32)
    b3 = params["b3"].astype(jnp.float32)

    x3 = x.reshape(n, c_in, hw)
    if hwp != hw:
        x3 = jnp.pad(x3, ((0, 0), (0, 0), (0, hwp - hw)))       # zero lanes (safe: gate uses /hw)

    # Block-batch size: target ~2 MiB of input+output per grid step (amortizes
    # per-step pipeline overhead), but keep >= 2 steps when possible so both
    # v7x TensorCores get work.  Double-buffered this stays well under the
    # default scoped-VMEM limits on v5e/v6e/v7x.
    dtype_bytes = jnp.dtype(x.dtype).itemsize
    per_img = (c_in + c_out) * hwp * dtype_bytes
    nb = max(1, int((2 << 20) // per_img))
    nb = min(nb, n)
    if n >= 2:
        nb = min(nb, (n + 1) // 2)
    n_pad = ((n + nb - 1) // nb) * nb
    if n_pad != n:
        x3 = jnp.pad(x3, ((0, n_pad - n), (0, 0), (0, 0)))

    grid = (n_pad // nb,)
    kernel = _make_kernel(nb, 1.0 / hw)

    cost = pl.CostEstimate(
        flops=int(2 * n * c_out * c_in * hw + 4 * n * c_out * hw),
        transcendentals=int(n * c_out * hw + n * c_out),
        bytes_accessed=int(x3.size * dtype_bytes
                           + n_pad * c_out * hwp * dtype_bytes
                           + 2 * c_out * c_in * 4),
    )

    out = pl.pallas_call(
        kernel,
        out_shape=jax.ShapeDtypeStruct((n_pad, c_out, hwp), x.dtype),
        grid=grid,
        in_specs=[
            pl.BlockSpec((nb, c_in, hwp), lambda i: (i, 0, 0)),  # Nb image planes / step
            pl.BlockSpec((c_out, c_in), lambda i: (0, 0)),       # folded conv+BN weight
            pl.BlockSpec((c_out, 1), lambda i: (0, 0)),          # folded conv+BN bias
            pl.BlockSpec((c_out, c_in), lambda i: (0, 0)),       # gate conv weight
            pl.BlockSpec((c_out, 1), lambda i: (0, 0)),          # gate conv bias
        ],
        out_specs=pl.BlockSpec((nb, c_out, hwp), lambda i: (i, 0, 0)),
        compiler_params=pltpu.CompilerParams(
            dimension_semantics=("parallel",)),
        cost_estimate=cost,
    )(x3, w1_eff, b1_eff.reshape(c_out, 1), w3_full, b3.reshape(c_out, 1))

    out = out[:n, :, :hw]
    return out.reshape(n, c_out, h, w)


def _reference(xs, params, *, dim=1, groups=2, eps=1e-5):
    """Pure-JAX reference matching the PyTorch module (eval-mode BN)."""
    x = jnp.concatenate(xs, axis=dim)
    n, c_in, h, w = x.shape

    def grouped_conv1x1(inp, wt, b):
        c_out = wt.shape[0]
        out_g, in_g = c_out // groups, c_in // groups
        outs = []
        for g in range(groups):
            wg = wt[g * out_g:(g + 1) * out_g, :, 0, 0]
            xg = inp[:, g * in_g:(g + 1) * in_g]
            outs.append(jnp.einsum("oc,nchw->nohw", wg, xg)
                        + b[g * out_g:(g + 1) * out_g][None, :, None, None])
        return jnp.concatenate(outs, axis=1)

    y = grouped_conv1x1(x, params["w1"], params["b1"])
    sc = params["bn_w"] / jnp.sqrt(params["bn_var"] + eps)
    y = sc[None, :, None, None] * (y - params["bn_mean"][None, :, None, None]) \
        + params["bn_b"][None, :, None, None]
    pooled = jnp.mean(x, axis=(2, 3), keepdims=True)
    gate = jax.nn.sigmoid(grouped_conv1x1(pooled, params["w3"], params["b3"]))
    z = y * gate
    return z * jax.nn.sigmoid(z)


if __name__ == "__main__":
    key = jax.random.PRNGKey(0)
    ks = jax.random.split(key, 10)
    n, c_each, h, w = 2, 4, 16, 16
    groups = 2
    c_in = 2 * c_each          # after torch.cat along channels
    c_out = 8

    x1 = jax.random.normal(ks[0], (n, c_each, h, w), jnp.float32)
    x2 = jax.random.normal(ks[1], (n, c_each, h, w), jnp.float32)

    params = dict(
        w1=jax.random.normal(ks[2], (c_out, c_in // groups, 1, 1), jnp.float32) * 0.3,
        b1=jax.random.normal(ks[3], (c_out,), jnp.float32) * 0.1,
        bn_w=jax.random.uniform(ks[4], (c_out,), jnp.float32, minval=0.5, maxval=1.5),
        bn_b=jax.random.normal(ks[5], (c_out,), jnp.float32) * 0.1,
        bn_mean=jax.random.normal(ks[6], (c_out,), jnp.float32) * 0.1,
        bn_var=jax.random.uniform(ks[7], (c_out,), jnp.float32, minval=0.5, maxval=1.5),
        w3=jax.random.normal(ks[8], (c_out, c_in // groups, 1, 1), jnp.float32) * 0.3,
        b3=jax.random.normal(ks[9], (c_out,), jnp.float32) * 0.1,
    )

    # Case 1: HW already a multiple of 128 (16x16 = 256).
    y = fuse_no_3x3([x1, x2], params, dim=1, groups=groups)
    jax.block_until_ready(y)
    assert y.shape == (n, c_out, h, w) and y.dtype == x1.dtype
    y_ref = _reference([x1, x2], params, dim=1, groups=groups)
    assert bool(jnp.allclose(y, y_ref, rtol=2e-2, atol=2e-2)), \
        float(jnp.max(jnp.abs(y - y_ref)))

    # Case 2: HW not a multiple of 128 (14x14 = 196) -> exercises lane padding
    # and the true-HW gate mean.
    h2 = w2 = 14
    x1b = jax.random.normal(ks[0], (n, c_each, h2, w2), jnp.float32)
    x2b = jax.random.normal(ks[1], (n, c_each, h2, w2), jnp.float32)
    y2 = fuse_no_3x3([x1b, x2b], params, dim=1, groups=groups)
    jax.block_until_ready(y2)
    y2_ref = _reference([x1b, x2b], params, dim=1, groups=groups)
    assert y2.shape == (n, c_out, h2, w2)
    assert bool(jnp.allclose(y2, y2_ref, rtol=2e-2, atol=2e-2)), \
        float(jnp.max(jnp.abs(y2 - y2_ref)))

    print("KERNEL_OK")
</pallas_src>

<mosaic_0001>
module attributes {stable_mosaic.version = 11 : i64} {
  func.func @kernel(%arg0: i32, %arg1: memref<1x8x256xf32, #tpu.memory_space<vmem>>, %arg2: memref<8x8xf32, #tpu.memory_space<vmem>>, %arg3: memref<8x1xf32, #tpu.memory_space<vmem>>, %arg4: memref<8x8xf32, #tpu.memory_space<vmem>>, %arg5: memref<8x1xf32, #tpu.memory_space<vmem>>, %arg6: memref<1x8x256xf32, #tpu.memory_space<vmem>>) attributes {dimension_semantics = [#tpu.dimension_semantics<parallel>], iteration_bounds = array<i64: 2>, scalar_prefetch = 0 : i64, scratch_operands = 0 : i64, tpu.core_type = #tpu.core_type<tc>, window_params = [{transform_indices = @transform_0, window_bounds = array<i64: 1, 8, 256>}, {pipeline_mode = #tpu.pipeline_mode<synchronous>, transform_indices = @transform_1, window_bounds = array<i64: 8, 8>}, {pipeline_mode = #tpu.pipeline_mode<synchronous>, transform_indices = @transform_2, window_bounds = array<i64: 8, 1>}, {pipeline_mode = #tpu.pipeline_mode<synchronous>, transform_indices = @transform_3, window_bounds = array<i64: 8, 8>}, {pipeline_mode = #tpu.pipeline_mode<synchronous>, transform_indices = @transform_4, window_bounds = array<i64: 8, 1>}, {transform_indices = @transform_5, window_bounds = array<i64: 1, 8, 256>}]} {
    %c0 = arith.constant 0 : index
    %c0_0 = arith.constant 0 : index
    %0 = vector.load %arg2[%c0, %c0_0] : memref<8x8xf32, #tpu.memory_space<vmem>>, vector<8x8xf32>
    %c0_1 = arith.constant 0 : index
    %c0_2 = arith.constant 0 : index
    %1 = vector.load %arg3[%c0_1, %c0_2] : memref<8x1xf32, #tpu.memory_space<vmem>>, vector<8x1xf32>
    %c0_3 = arith.constant 0 : index
    %c0_4 = arith.constant 0 : index
    %2 = vector.load %arg4[%c0_3, %c0_4] : memref<8x8xf32, #tpu.memory_space<vmem>>, vector<8x8xf32>
    %c0_5 = arith.constant 0 : index
    %c0_6 = arith.constant 0 : index
    %3 = vector.load %arg5[%c0_5, %c0_6] : memref<8x1xf32, #tpu.memory_space<vmem>>, vector<8x1xf32>
    %c0_7 = arith.constant 0 : index
    %c0_8 = arith.constant 0 : index
    %c0_9 = arith.constant 0 : index
    %4 = vector.load %arg1[%c0_7, %c0_8, %c0_9] : memref<1x8x256xf32, #tpu.memory_space<vmem>>, vector<1x8x256xf32>
    %5 = vector.shape_cast %4 : vector<1x8x256xf32> to vector<8x256xf32>
    %cst = arith.constant dense<0.000000e+00> : vector<8x256xf32>
    %6 = tpu.matmul %0, %5, %cst {dimension_numbers = #tpu.dot_dimension_numbers<[1], [0], [0], [1], [0, 0, 1, 1], [], []>} : vector<8x8xf32>, vector<8x256xf32>, vector<8x256xf32> -> vector<8x256xf32>
    %7 = vector.broadcast %1 : vector<8x1xf32> to vector<8x256xf32>
    %8 = arith.addf %6, %7 : vector<8x256xf32>
    %cst_10 = arith.constant dense<0.000000e+00> : vector<8xf32>
    %9 = vector.multi_reduction <add>, %5, %cst_10 [1] : vector<8x256xf32> to vector<8xf32>
    %10 = vector.shape_cast %9 : vector<8xf32> to vector<8x1xf32>
    %cst_11 = arith.constant 3.906250e-03 : f32
    %11 = vector.broadcast %cst_11 : f32 to vector<8x1xf32>
    %12 = arith.mulf %10, %11 : vector<8x1xf32>
    %cst_12 = arith.constant dense<0.000000e+00> : vector<8x1xf32>
    %13 = tpu.matmul %2, %12, %cst_12 {dimension_numbers = #tpu.dot_dimension_numbers<[1], [0], [0], [1], [0, 0, 1, 1], [], []>} : vector<8x8xf32>, vector<8x1xf32>, vector<8x1xf32> -> vector<8x1xf32>
    %14 = arith.addf %13, %3 : vector<8x1xf32>
    %15 = arith.negf %14 : vector<8x1xf32>
    %16 = math.exp %15 : vector<8x1xf32>
    %cst_13 = arith.constant 1.000000e+00 : f32
    %17 = vector.broadcast %cst_13 : f32 to vector<8x1xf32>
    %18 = arith.addf %17, %16 : vector<8x1xf32>
    %19 = arith.divf %17, %18 : vector<8x1xf32>
    %20 = vector.broadcast %19 : vector<8x1xf32> to vector<8x256xf32>
    %21 = arith.mulf %8, %20 : vector<8x256xf32>
    %22 = arith.negf %21 : vector<8x256xf32>
    %23 = math.exp %22 : vector<8x256xf32>
    %cst_14 = arith.constant 1.000000e+00 : f32
    %24 = vector.broadcast %cst_14 : f32 to vector<8x256xf32>
    %25 = arith.addf %24, %23 : vector<8x256xf32>
    %26 = arith.divf %24, %25 : vector<8x256xf32>
    %27 = arith.mulf %21, %26 : vector<8x256xf32>
    %c0_15 = arith.constant 0 : index
    %c0_16 = arith.constant 0 : index
    %c0_17 = arith.constant 0 : index
    %28 = vector.load %arg6[%c0_15, %c0_16, %c0_17] : memref<1x8x256xf32, #tpu.memory_space<vmem>>, vector<1x8x256xf32>
    %29 = vector.shape_cast %28 : vector<1x8x256xf32> to vector<8x256xf32>
    %30 = vector.shape_cast %27 : vector<8x256xf32> to vector<1x8x256xf32>
    tpu.vector_store %arg6[%c0_15, %c0_16, %c0_17], %30 {strides = array<i32>} : memref<1x8x256xf32, #tpu.memory_space<vmem>>, vector<1x8x256xf32>,
    return
  }
  func.func @transform_0(%arg0: i32) -> (i32, i32, i32) {
    %c0_i32 = arith.constant 0 : i32
    %c0_i32_0 = arith.constant 0 : i32
    %c0_i32_1 = arith.constant 0 : i32
    return %arg0, %c0_i32, %c0_i32_0 : i32, i32, i32
  }
  func.func @transform_1(%arg0: i32) -> (i32, i32) {
    %c0_i32 = arith.constant 0 : i32
    %c0_i32_0 = arith.constant 0 : i32
    %c0_i32_1 = arith.constant 0 : i32
    return %c0_i32, %c0_i32_0 : i32, i32
  }
  func.func @transform_2(%arg0: i32) -> (i32, i32) {
    %c0_i32 = arith.constant 0 : i32
    %c0_i32_0 = arith.constant 0 : i32
    %c0_i32_1 = arith.constant 0 : i32
    return %c0_i32, %c0_i32_0 : i32, i32
  }
  func.func @transform_3(%arg0: i32) -> (i32, i32) {
    %c0_i32 = arith.constant 0 : i32
    %c0_i32_0 = arith.constant 0 : i32
    %c0_i32_1 = arith.constant 0 : i32
    return %c0_i32, %c0_i32_0 : i32, i32
  }
  func.func @transform_4(%arg0: i32) -> (i32, i32) {
    %c0_i32 = arith.constant 0 : i32
    %c0_i32_0 = arith.constant 0 : i32
    %c0_i32_1 = arith.constant 0 : i32
    return %c0_i32, %c0_i32_0 : i32, i32
  }
  func.func @transform_5(%arg0: i32) -> (i32, i32, i32) {
    %c0_i32 = arith.constant 0 : i32
    %c0_i32_0 = arith.constant 0 : i32
    %c0_i32_1 = arith.constant 0 : i32
    return %arg0, %c0_i32, %c0_i32_0 : i32, i32, i32
  }
}

</mosaic_0001>

<llo_original>
// kernel: tpu_custom_call.1
$region0: #{tpu_custom_call.1}
  #allocation0 [shape = 'u32[]', space=smem, size = 0x4, offset = 0x4, fixed_abs, tag = 'smem constant byte address 0x4 - core index']
  #allocation1 [shape = 'u32[144,128]{1,0:T(1,128)}', space=vmem, size = 0x12000, scoped, tag = 'internal scratch']
  %s0 = inlined_call_operand.hbm [shape: f32[2,8,256], index: 0, kind: input, shape index: {}]
  %s1 = inlined_call_operand.vmem [shape: f32[8,8], index: 1, kind: input, shape index: {}]
  %s2 = inlined_call_operand.vmem [shape: f32[8,1], index: 2, kind: input, shape index: {}]
  %s3 = inlined_call_operand.vmem [shape: f32[8,8], index: 3, kind: input, shape index: {}]
  %s4 = inlined_call_operand.vmem [shape: f32[8,1], index: 4, kind: input, shape index: {}]
  %s5 = inlined_call_operand.hbm [shape: f32[2,8,256], index: 5, kind: output, shape index: {}]
  %s6 = sld [smem:[#allocation0]]
  $region57: #{tpu_custom_call.1} parent=0
    _
  %s8 = ssub.s32 1, %s6
  %s9 = scalar_select 0, %s8, %s6
  $region1: #{tpu_custom_call.1} parent=0
    #allocation2 [shape = 'u8[16384]{0}', space=vmem, size = 0x4000, scoped, tag = 'input window, operand 0']
    #allocation3 [shape = 's32[2]{0}', space=sflag, size = 0x8, scoped, tag = 'scoped memory for tpu_custom_call.1']
    #allocation4 [shape = 's32[2]{0}', space=sflag, size = 0x8, scoped, tag = 'scoped memory for tpu_custom_call.1']
    #allocation5 [shape = 'u8[16384]{0}', space=vmem, size = 0x4000, scoped, tag = 'output window, operand 0']
    %10 = vsyncpa [#allocation3], 0
    %s11 = scalar_lea.sflag [#allocation3], 1
    %12 = vsyncpa %s11, 0
    %13 = vsyncpa [#allocation4], 0
    %s14 = scalar_lea.sflag [#allocation4], 1
    %15 = vsyncpa %s14, 0
    loop: start=0, step=1, limit=4
    $region2: #{tpu_custom_call.1} parent=1 // loop_pre_header
      _
    $region3: #{tpu_custom_call.1} parent=1 // loop_header
      %s17 = sphi 0, %s21
      %p18 = scmp.ge.s32.totalorder %s17, 4
      %s27 = sphi 0, %s29
      %s30 = sphi 0, %s27
      %s31 = sphi 0, %s30
      %s47 = sphi 0, %s31
      %s51 = sphi 0, %s51
      %s53 = sphi 0, %s51
      %s54 = sphi 0, %s53
      %s68 = sphi 0, %s54
      %s72 = sphi 0, %s72
      %s74 = sphi 0, %s72
      %s75 = sphi 0, %s74
      %s89 = sphi 0, %s75
      %s93 = sphi 0, %s93
      %s95 = sphi 0, %s93
      %s96 = sphi 0, %s95
      %s110 = sphi 0, %s96
      %s114 = sphi 0, %s114
      %s116 = sphi 0, %s114
      %s117 = sphi 0, %s116
      %s131 = sphi 0, %s117
      %s137 = sphi 0, %s139
      %s140 = sphi 0, %s137
      %s141 = sphi 0, %s140
      %s157 = sphi 0, %s141
    $region4: #{tpu_custom_call.1} parent=1 // loop_header_branch
      %20 = sbr.rel (%p18) target = $region8
    $region5: #{tpu_custom_call.1} parent=1 // loop_body
      %s22 = ssub.s32 %s17, 1
      %s23 = ssub.s32 %s17, 2
      %s24 = sadd.s32 %s17, 1
      %s25 = ssub.s32 %s17, %s24
      %p26 = scmp.eq.s32.totalorder %s25, 0
      %s28 = sadd.s32 %s27, 1
      %s29 = scalar_select %p26, %s27, %s28
      %p32 = pneg %p26
      %p33 = scmp.eq.s32.totalorder %s17, 1
      %p34 = por %p32, %p33
      %p35 = scmp.ne.s32.totalorder %s27, %s30
      %p36 = scmp.eq.s32.totalorder %s17, 0
      %p37 = por %p35, %p36
      %p38 = scmp.ne.s32.totalorder %s27, %s30
      %p39 = scmp.eq.s32.totalorder %s22, 1
      %p40 = por %p38, %p39
      %p41 = scmp.ne.s32.totalorder %s30, %s31
      %p42 = scmp.eq.s32.totalorder %s22, 0
      %p43 = por %p41, %p42
      %p44 = scmp.ne.s32.totalorder %s30, %s31
      %p45 = scmp.eq.s32.totalorder %s23, 1
      %p46 = por %p44, %p45
      %p48 = scmp.ne.s32.totalorder %s31, %s47
      %p49 = scmp.eq.s32.totalorder %s23, 0
      %p50 = por %p48, %p49
      %s52 = sadd.s32 %s51, 1
      %p55 = scmp.eq.s32.totalorder %s17, 1
      %p56 = scmp.ne.s32.totalorder %s51, %s53
      %p57 = scmp.eq.s32.totalorder %s17, 0
      %p58 = por %p56, %p57
      %p59 = scmp.ne.s32.totalorder %s51, %s53
      %p60 = scmp.eq.s32.totalorder %s22, 1
      %p61 = por %p59, %p60
      %p62 = scmp.ne.s32.totalorder %s53, %s54
      %p63 = scmp.eq.s32.totalorder %s22, 0
      %p64 = por %p62, %p63
      %p65 = scmp.ne.s32.totalorder %s53, %s54
      %p66 = scmp.eq.s32.totalorder %s23, 1
      %p67 = por %p65, %p66
      %p69 = scmp.ne.s32.totalorder %s54, %s68
      %p70 = scmp.eq.s32.totalorder %s23, 0
      %p71 = por %p69, %p70
      %s73 = sadd.s32 %s72, 1
      %p76 = scmp.eq.s32.totalorder %s17, 1
      %p77 = scmp.ne.s32.totalorder %s72, %s74
      %p78 = scmp.eq.s32.totalorder %s17, 0
      %p79 = por %p77, %p78
      %p80 = scmp.ne.s32.totalorder %s72, %s74
      %p81 = scmp.eq.s32.totalorder %s22, 1
      %p82 = por %p80, %p81
      %p83 = scmp.ne.s32.totalorder %s74, %s75
      %p84 = scmp.eq.s32.totalorder %s22, 0
      %p85 = por %p83, %p84
      %p86 = scmp.ne.s32.totalorder %s74, %s75
      %p87 = scmp.eq.s32.totalorder %s23, 1
      %p88 = por %p86, %p87
      %p90 = scmp.ne.s32.totalorder %s75, %s89
      %p91 = scmp.eq.s32.totalorder %s23, 0
      %p92 = por %p90, %p91
      %s94 = sadd.s32 %s93, 1
      %p97 = scmp.eq.s32.totalorder %s17, 1
      %p98 = scmp.ne.s32.totalorder %s93, %s95
      %p99 = scmp.eq.s32.totalorder %s17, 0
      %p100 = por %p98, %p99
      %p101 = scmp.ne.s32.totalorder %s93, %s95
      %p102 = scmp.eq.s32.totalorder %s22, 1
      %p103 = por %p101, %p102
      %p104 = scmp.ne.s32.totalorder %s95, %s96
      %p105 = scmp.eq.s32.totalorder %s22, 0
      %p106 = por %p104, %p105
      %p107 = scmp.ne.s32.totalorder %s95, %s96
      %p108 = scmp.eq.s32.totalorder %s23, 1
      %p109 = por %p107, %p108
      %p111 = scmp.ne.s32.totalorder %s96, %s110
      %p112 = scmp.eq.s32.totalorder %s23, 0
      %p113 = por %p111, %p112
      %s115 = sadd.s32 %s114, 1
      %p118 = scmp.eq.s32.totalorder %s17, 1
      %p119 = scmp.ne.s32.totalorder %s114, %s116
      %p120 = scmp.eq.s32.totalorder %s17, 0
      %p121 = por %p119, %p120
      %p122 = scmp.ne.s32.totalorder %s114, %s116
      %p123 = scmp.eq.s32.totalorder %s22, 1
      %p124 = por %p122, %p123
      %p125 = scmp.ne.s32.totalorder %s116, %s117
      %p126 = scmp.eq.s32.totalorder %s22, 0
      %p127 = por %p125, %p126
      %p128 = scmp.ne.s32.totalorder %s116, %s117
      %p129 = scmp.eq.s32.totalorder %s23, 1
      %p130 = por %p128, %p129
      %p132 = scmp.ne.s32.totalorder %s117, %s131
      %p133 = scmp.eq.s32.totalorder %s23, 0
      %p134 = por %p132, %p133
      %s135 = ssub.s32 %s17, %s24
      %p136 = scmp.eq.s32.totalorder %s135, 0
      %s138 = sadd.s32 %s137, 1
      %s139 = scalar_select %p136, %s137, %s138
      %p142 = pneg %p136
      %p143 = scmp.eq.s32.totalorder %s17, 1
      %p144 = por %p142, %p143
      %p145 = scmp.ne.s32.totalorder %s137, %s140
      %p146 = scmp.eq.s32.totalorder %s17, 0
      %p147 = por %p145, %p146
      %p148 = scmp.ne.s32.totalorder %s137, %s140
      %p149 = scmp.eq.s32.totalorder %s22, 1
      %p150 = por %p148, %p149
      %p151 = scmp.ne.s32.totalorder %s140, %s141
      %p152 = scmp.eq.s32.totalorder %s22, 0
      %p153 = por %p151, %p152
      %p154 = scmp.ne.s32.totalorder %s140, %s141
      %p155 = scmp.eq.s32.totalorder %s23, 1
      %p156 = por %p154, %p155
      %p158 = scmp.ne.s32.totalorder %s141, %s157
      %p159 = scmp.eq.s32.totalorder %s23, 0
      %p160 = por %p158, %p159
      %p161 = scmp.le.s32.totalorder 1, %s17
      %p162 = scmp.lt.s32.totalorder %s17, 3
      %p163 = pnand %p161, %p162
      %p164 = pneg %p163
      // Predicated region
      $region9: #{tpu_custom_call.1} parent=5 // pred_check
        _
      $region10: #{tpu_custom_call.1} parent=5 // pred_check_branch
        %166 = sbr.rel (%p163) target = $region12
      $region11: #{tpu_custom_call.1} parent=5 // pred_region
        %s167 = ssub.s32 %s17, 1
        // Predicated region
        $region13: #{tpu_custom_call.1} parent=11 // pred_check
          %p168 = pneg %p64
        $region14: #{tpu_custom_call.1} parent=11 // pred_check_branch
          %170 = sbr.rel (%p168) target = $region16
        $region15: #{tpu_custom_call.1} parent=11 // pred_region
          _
        $region16: #{tpu_custom_call.1} parent=11 // pred_fallthru
          _
        // Predicated region
        $region17: #{tpu_custom_call.1} parent=11 // pred_check
          %p171 = pneg %p85
        $region18: #{tpu_custom_call.1} parent=11 // pred_check_branch
          %173 = sbr.rel (%p171) target = $region20
        $region19: #{tpu_custom_call.1} parent=11 // pred_region
          _
        $region20: #{tpu_custom_call.1} parent=11 // pred_fallthru
          _
        // Predicated region
        $region21: #{tpu_custom_call.1} parent=11 // pred_check
          %p174 = pneg %p106
        $region22: #{tpu_custom_call.1} parent=11 // pred_check_branch
          %176 = sbr.rel (%p174) target = $region24
        $region23: #{tpu_custom_call.1} parent=11 // pred_region
          _
        $region24: #{tpu_custom_call.1} parent=11 // pred_fallthru
          _
        // Predicated region
        $region25: #{tpu_custom_call.1} parent=11 // pred_check
          %p177 = pneg %p127
        $region26: #{tpu_custom_call.1} parent=11 // pred_check_branch
          %179 = sbr.rel (%p177) target = $region28
        $region27: #{tpu_custom_call.1} parent=11 // pred_region
          _
        $region28: #{tpu_custom_call.1} parent=11 // pred_fallthru
          _
      $region12: #{tpu_custom_call.1} parent=5 // pred_fallthru
        _
      %p180 = scmp.lt.s32.totalorder %s17, 2
      // Predicated region
      $region29: #{tpu_custom_call.1} parent=5 // pred_check
        %p181 = pneg %p180
      $region30: #{tpu_custom_call.1} parent=5 // pred_check_branch
        %183 = sbr.rel (%p181) target = $region32
      $region31: #{tpu_custom_call.1} parent=5 // pred_region
        // Predicated region
        $region33: #{tpu_custom_call.1} parent=31 // pred_check
          %p184 = pneg %p37
        $region34: #{tpu_custom_call.1} parent=31 // pred_check_branch
          %186 = sbr.rel (%p184) target = $region36
        $region35: #{tpu_custom_call.1} parent=31 // pred_region
          %s187 = sand.u32 %s27, 1
          %s188 = scalar_lea.sflag [#allocation3], %s187
          %s189 = sand.u32 %s27, 1
          %s190 = smul.addr %s189, 16
          %s191 = scalar_lea.vmem [#allocation2], %s190
          %s193 = ssub.s32 256, 256
          %194 = vsyncadd %s188, %s193
          %s195 = smul.addr %s17, 2
          %s196 = smul.addr %s195, 128
          %s197 = scalar_lea.hbm %s0, %s196
          %s199 = sshll.u32 %s191, 4
          %s200 = int_to_ptr.vmem [resolvable:$true] %s199
          %202 = dma.hbm_to_vmem [thread:$0]  %s197, 256, %s200, %s188
        $region36: #{tpu_custom_call.1} parent=31 // pred_fallthru
          _
      $region32: #{tpu_custom_call.1} parent=5 // pred_fallthru
        _
      %p203 = scmp.le.s32.totalorder 1, %s17
      %p204 = scmp.lt.s32.totalorder %s17, 3
      %p205 = pnand %p203, %p204
      %p206 = pneg %p205
      // Predicated region
      $region37: #{tpu_custom_call.1} parent=5 // pred_check
        _
      $region38: #{tpu_custom_call.1} parent=5 // pred_check_branch
        %208 = sbr.rel (%p205) target = $region40
      $region39: #{tpu_custom_call.1} parent=5 // pred_region
        %s209 = ssub.s32 %s17, 1
        %s210 = sand.u32 %s30, 1
        %s211 = scalar_lea.sflag [#allocation3], %s210
        %s212 = sand.u32 %s30, 1
        %s213 = smul.addr %s212, 16
        %s214 = scalar_lea.vmem [#allocation2], %s213
        // Predicated region
        $region41: #{tpu_custom_call.1} parent=39 // pred_check
          %p215 = pneg %p43
        $region42: #{tpu_custom_call.1} parent=39 // pred_check_branch
          %217 = sbr.rel (%p215) target = $region44
        $region43: #{tpu_custom_call.1} parent=39 // pred_region
          %218 = dma.done %s211, 256
        $region44: #{tpu_custom_call.1} parent=39 // pred_fallthru
          _
        %s219 = sand.u32 %s30, 1
        %s220 = scalar_lea.sflag [#allocation3], %s219
        %s221 = sand.u32 %s30, 1
        %s222 = smul.addr %s221, 16
        %s223 = scalar_lea.vmem [#allocation2], %s222
        %p224 = pneg %p43
        %p225 = pneg %p40
        %p226 = pneg %p64
        %p227 = pneg %p61
        %p228 = pneg %p85
        %p229 = pneg %p82
        %p230 = pneg %p106
        %p231 = pneg %p103
        %p232 = pneg %p127
        %p233 = pneg %p124
        %p234 = pneg %p153
        %p235 = pneg %p150
        %s236 = sand.u32 %s140, 1
        %s237 = scalar_lea.sflag [#allocation4], %s236
        %s238 = sand.u32 %s140, 1
        %s239 = smul.addr %s238, 16
        %s240 = scalar_lea.vmem [#allocation5], %s239
        %v241 = vld [vmem:[%s1] sm:$0xff]
        %v242 = vld [vmem:[%s2] sm:$0xff]
        %v243 = vld [vmem:[%s3] sm:$0xff]
        %v244 = vld [vmem:[%s4] sm:$0xff]
        %v245 = vld [vmem:[%s214] sm:$0xff]
        %v246 = vld [vmem:[%s214 + $0x8] sm:$0xff]
        %248 = vset.pattern.permute.xlu0 0
        %249 = vperm.xlu0 %248, %v242
        %v250 = vpop.permute.xlu0 %249
        %vm252 = vcmask 64512
        %v254 = vsel %vm252, %v241, 0
        %256 = vmatprep.subr.mxu0 %v246
        %257 = vmatpush1.msra.mxu0 %v245
        %258 = vmatprep.subr.mxu0 0.0
        %259 = vmatpush1.msra.mxu0 0.0
        %260 = vmatprep.subr.mxu0 0.0
        %261 = vmatpush1.msra.mxu0 0.0
        %262 = vmatprep.subr.mxu0 0.0
        %263 = vmatpush1.msra.mxu0 0.0
        %264 = vmatprep.subr.mxu0 0.0
        %265 = vmatpush1.msra.mxu0 0.0
        %266 = vmatprep.subr.mxu0 0.0
        %267 = vmatpush1.msra.mxu0 0.0
        %268 = vmatprep.subr.mxu0 0.0
        %269 = vmatpush1.msra.mxu0 0.0
        %270 = vmatprep.subr.mxu0 0.0
        %271 = vmatpush1.msra.mxu0 0.0
        %272 = vmatprep.subr.mxu0 0.0
        %273 = vmatpush1.msra.mxu0 0.0
        %274 = vmatprep.subr.mxu0 0.0
        %275 = vmatpush1.msra.mxu0 0.0
        %276 = vmatprep.subr.mxu0 0.0
        %277 = vmatpush1.msra.mxu0 0.0
        %278 = vmatprep.subr.mxu0 0.0
        %279 = vmatpush1.msra.mxu0 0.0
        %280 = vmatprep.subr.mxu0 0.0
        %281 = vmatpush1.msra.mxu0 0.0
        %282 = vmatprep.subr.mxu0 0.0
        %283 = vmatpush1.msra.mxu0 0.0
        %284 = vmatprep.subr.mxu0 0.0
        %285 = vmatpush1.msra.mxu0 0.0
        %286 = vmatprep.subr.mxu0 0.0
        %287 = vmatpush1.msra.mxu0 0.0
        %288 = vmatprep.subr.mxu0 0.0
        %289 = vmatpush1.msra.mxu0 0.0
        %290 = vmatprep.subr.mxu0 0.0
        %291 = vmatpush1.msra.mxu0 0.0
        %292 = vmatprep.subr.mxu0 0.0
        %293 = vmatpush1.msra.mxu0 0.0
        %294 = vmatprep.subr.mxu0 0.0
        %295 = vmatpush1.msra.mxu0 0.0
        %296 = vmatprep.subr.mxu0 0.0
        %297 = vmatpush1.msra.mxu0 0.0
        %298 = vmatprep.subr.mxu0 0.0
        %299 = vmatpush1.msra.mxu0 0.0
        %300 = vmatprep.subr.mxu0 0.0
        %301 = vmatpush1.msra.mxu0 0.0
        %302 = vmatprep.subr.mxu0 0.0
        %303 = vmatpush1.msra.mxu0 0.0
        %304 = vmatprep.subr.mxu0 0.0
        %305 = vmatpush1.msra.mxu0 0.0
        %306 = vmatprep.subr.mxu0 0.0
        %307 = vmatpush1.msra.mxu0 0.0
        %308 = vmatprep.subr.mxu0 0.0
        %309 = vmatpush1.msra.mxu0 0.0
        %310 = vmatprep.subr.mxu0 0.0
        %311 = vmatpush1.msra.mxu0 0.0
        %312 = vmatprep.subr.mxu0 0.0
        %313 = vmatpush1.msra.mxu0 0.0
        %314 = vmatprep.subr.mxu0 0.0
        %315 = vmatpush1.msra.mxu0 0.0
        %316 = vmatprep.subr.mxu0 0.0
        %317 = vmatpush1.msra.mxu0 0.0
        %318 = vmatprep.subr.mxu0 0.0
        %319 = vmatpush1.msra.mxu0 0.0
        %320 = vmatprep.mubr.f32.mxu0 0.0
        %321 = vmatmul.mubr.f32.gmra.mrb[0].mxu0 %v254
        %v322 = vpop.f32.mrb[0].mxu0
        %v323 = vadd.f32 %v250, %v322
        %v324 = vpop.f32.mrb[0].mxu0
        %v325 = vadd.f32 %v250, %v324
        %326 = vdwg.mxu0
        %v327 = vadd.f32 %v245, %v246
        %328 = vadd.xlane.f32.xlu0 %v327
        %v329 = vpop.xlane.xlu0 %328
        %v330 = vmul.f32 %v329, 0.00390625
        %v332 = vsel %vm252, %v243, 0
        %334 = vmatprep.subr.mxu0 0.0
        %335 = vmatpush1.msra.mxu0 %v330
        %336 = vmatprep.subr.mxu0 0.0
        %337 = vmatpush1.msra.mxu0 0.0
        %338 = vmatprep.subr.mxu0 0.0
        %339 = vmatpush1.msra.mxu0 0.0
        %340 = vmatprep.subr.mxu0 0.0
        %341 = vmatpush1.msra.mxu0 0.0
        %342 = vmatprep.subr.mxu0 0.0
        %343 = vmatpush1.msra.mxu0 0.0
        %344 = vmatprep.subr.mxu0 0.0
        %345 = vmatpush1.msra.mxu0 0.0
        %346 = vmatprep.subr.mxu0 0.0
        %347 = vmatpush1.msra.mxu0 0.0
        %348 = vmatprep.subr.mxu0 0.0
        %349 = vmatpush1.msra.mxu0 0.0
        %350 = vmatprep.subr.mxu0 0.0
        %351 = vmatpush1.msra.mxu0 0.0
        %352 = vmatprep.subr.mxu0 0.0
        %353 = vmatpush1.msra.mxu0 0.0
        %354 = vmatprep.subr.mxu0 0.0
        %355 = vmatpush1.msra.mxu0 0.0
        %356 = vmatprep.subr.mxu0 0.0
        %357 = vmatpush1.msra.mxu0 0.0
        %358 = vmatprep.subr.mxu0 0.0
        %359 = vmatpush1.msra.mxu0 0.0
        %360 = vmatprep.subr.mxu0 0.0
        %361 = vmatpush1.msra.mxu0 0.0
        %362 = vmatprep.subr.mxu0 0.0
        %363 = vmatpush1.msra.mxu0 0.0
        %364 = vmatprep.subr.mxu0 0.0
        %365 = vmatpush1.msra.mxu0 0.0
        %366 = vmatprep.subr.mxu0 0.0
        %367 = vmatpush1.msra.mxu0 0.0
        %368 = vmatprep.subr.mxu0 0.0
        %369 = vmatpush1.msra.mxu0 0.0
        %370 = vmatprep.subr.mxu0 0.0
        %371 = vmatpush1.msra.mxu0 0.0
        %372 = vmatprep.subr.mxu0 0.0
        %373 = vmatpush1.msra.mxu0 0.0
        %374 = vmatprep.subr.mxu0 0.0
        %375 = vmatpush1.msra.mxu0 0.0
        %376 = vmatprep.subr.mxu0 0.0
        %377 = vmatpush1.msra.mxu0 0.0
        %378 = vmatprep.subr.mxu0 0.0
        %379 = vmatpush1.msra.mxu0 0.0
        %380 = vmatprep.subr.mxu0 0.0
        %381 = vmatpush1.msra.mxu0 0.0
        %382 = vmatprep.subr.mxu0 0.0
        %383 = vmatpush1.msra.mxu0 0.0
        %384 = vmatprep.subr.mxu0 0.0
        %385 = vmatpush1.msra.mxu0 0.0
        %386 = vmatprep.subr.mxu0 0.0
        %387 = vmatpush1.msra.mxu0 0.0
        %388 = vmatprep.subr.mxu0 0.0
        %389 = vmatpush1.msra.mxu0 0.0
        %390 = vmatprep.subr.mxu0 0.0
        %391 = vmatpush1.msra.mxu0 0.0
        %392 = vmatprep.subr.mxu0 0.0
        %393 = vmatpush1.msra.mxu0 0.0
        %394 = vmatprep.subr.mxu0 0.0
        %395 = vmatpush1.msra.mxu0 0.0
        %396 = vmatprep.subr.mxu0 0.0
        %397 = vmatpush1.msra.mxu0 0.0
        %398 = vmatprep.mubr.f32.mxu0 0.0
        %399 = vmatmul.mubr.f32.gmra.mrb[0].mxu0 %v332
        %v400 = vpop.f32.mrb[0].mxu0
        %v401 = vadd.f32 %v244, %v400
        %v402 = vpop.f32.mrb[0].mxu0
        %403 = vdwg.mxu0
        %v404 = vxor.u32 %v401, 2147483648
        %v405 = vmul.f32 %v404, 1.442695
        %v406 = vpow.pop %v405
        %v407 = vadd.f32 %v406, 1.0
        %v408 = vrcp.pop %v407
        %v409 = vmul.f32 1.0, %v408
        %411 = vset.pattern.permute.xlu0 0
        %412 = vperm.xlu0 %411, %v409
        %v413 = vpop.permute.xlu0 %412
        %v415 = vmul.f32 %v323, %v413
        %v416 = vmul.f32 %v325, %v413
        %v417 = vxor.u32 %v415, 2147483648
        %v418 = vxor.u32 %v416, 2147483648
        %v419 = vmul.f32 %v417, 1.442695
        %v420 = vpow.pop %v419
        %v421 = vmul.f32 %v418, 1.442695
        %v422 = vpow.pop %v421
        %v423 = vadd.f32 %v420, 1.0
        %v424 = vadd.f32 %v422, 1.0
        %v425 = vrcp.pop %v423
        %v426 = vmul.f32 1.0, %v425
        %v427 = vrcp.pop %v424
        %v428 = vmul.f32 1.0, %v427
        %v429 = vmul.f32 %v415, %v426
        %v430 = vmul.f32 %v416, %v428
        %431 = vst [vmem:[%s240] sm:$0xff] %v429
        %432 = vst [vmem:[%s240 + $0x8] sm:$0xff] %v430
        %s433 = sand.u32 %s140, 1
        %s434 = scalar_lea.sflag [#allocation4], %s433
        %s435 = sand.u32 %s140, 1
        %s436 = smul.addr %s435, 16
        %s437 = scalar_lea.vmem [#allocation5], %s436
        // Predicated region
        $region45: #{tpu_custom_call.1} parent=39 // pred_check
          %p438 = pneg %p150
        $region46: #{tpu_custom_call.1} parent=39 // pred_check_branch
          %440 = sbr.rel (%p438) target = $region48
        $region47: #{tpu_custom_call.1} parent=39 // pred_region
          %s442 = ssub.s32 256, 256
          %443 = vsyncadd %s434, %s442
          %s444 = smul.addr %s22, 2
          %s445 = smul.addr %s444, 128
          %s446 = scalar_lea.hbm %s5, %s445
          %s448 = sshll.u32 %s437, 4
          %s449 = int_to_ptr.vmem [resolvable:$true] %s448
          %451 = dma.vmem_to_hbm [thread:$0]  %s449, 256, %s446, %s434
        $region48: #{tpu_custom_call.1} parent=39 // pred_fallthru
          _
      $region40: #{tpu_custom_call.1} parent=5 // pred_fallthru
        _
      %p452 = scmp.le.s32.totalorder 2, %s17
      // Predicated region
      $region49: #{tpu_custom_call.1} parent=5 // pred_check
        %p453 = pneg %p452
      $region50: #{tpu_custom_call.1} parent=5 // pred_check_branch
        %455 = sbr.rel (%p453) target = $region52
      $region51: #{tpu_custom_call.1} parent=5 // pred_region
        %s456 = ssub.s32 %s17, 2
        // Predicated region
        $region53: #{tpu_custom_call.1} parent=51 // pred_check
          %p457 = pneg %p156
        $region54: #{tpu_custom_call.1} parent=51 // pred_check_branch
          %459 = sbr.rel (%p457) target = $region56
        $region55: #{tpu_custom_call.1} parent=51 // pred_region
          %s460 = sand.u32 %s141, 1
          %s461 = scalar_lea.sflag [#allocation4], %s460
          %s462 = sand.u32 %s141, 1
          %s463 = smul.addr %s462, 16
          %s464 = scalar_lea.vmem [#allocation5], %s463
          %465 = dma.done %s461, 256
        $region56: #{tpu_custom_call.1} parent=51 // pred_fallthru
          _
      $region52: #{tpu_custom_call.1} parent=5 // pred_fallthru
        _
    $region6: #{tpu_custom_call.1} parent=1 // loop_footer
      %s21 = sadd.s32 1, %s17
    $region7: #{tpu_custom_call.1} parent=1 // loop_footer_branch
      %16 = sbr.rel target = $region3
    $region8: #{tpu_custom_call.1} parent=1 // loop_exit
      _
    %466 = vsyncpa [#allocation3], 1
    %s467 = scalar_lea.sflag [#allocation3], 1
    %468 = vsyncpa %s467, 1
    %469 = vsyncpa [#allocation4], 1
    %s470 = scalar_lea.sflag [#allocation4], 1
    %471 = vsyncpa %s470, 1

</llo_original>
